<compile_context>
chip_gen: v7x
topology: tpu7x:2x2x1
jax: 0.10.0
libtpu: 0.0.40
codegen_flags: <defaults>
</compile_context>

<pallas_src>
import jax
import jax.numpy as jnp
from jax.experimental import pallas as pl
from jax.experimental.pallas import tpu as pltpu


# ----------------------------------------------------------------------------
# Kernel: pure streaming broadcast add (memory-bound).
# ----------------------------------------------------------------------------
def _add_pe_kernel(x_ref, pe_ref, o_ref):
    # x_ref, o_ref: [TB, TL, C] tiles of the (possibly flattened) input/output.
    # pe_ref:       [TL, C] tile of the PE table (same dtype as x), broadcast
    #               over the TB batch rows of this step.
    o_ref[...] = x_ref[...] + pe_ref[...][None, :, :]


# ----------------------------------------------------------------------------
# PE table (the module's registered buffer; built once, outside the kernel).
# ----------------------------------------------------------------------------
def _build_pe(L, D, dtype):
    """pe[p, 2i] = sin(p * w_i), pe[p, 2i+1] = cos(p * w_i), w_i = 10000^(-2i/D)."""
    pos = jnp.arange(L, dtype=jnp.float32)[:, None]                 # [L, 1]
    dim = jnp.arange(D, dtype=jnp.int32)[None, :]                   # [1, D]
    half = (dim // 2).astype(jnp.float32)
    inv_freq = jnp.exp((-2.0 * jnp.log(10000.0) / float(D)) * half)  # [1, D]
    angle = pos * inv_freq                                           # [L, D]
    pe = jnp.where((dim % 2) == 0, jnp.sin(angle), jnp.cos(angle))
    return pe.astype(dtype)


# ----------------------------------------------------------------------------
# Tile planning (VMEM-budget aware on every path).
# ----------------------------------------------------------------------------
_TILE_BYTES_CAP = 2 * 1024 * 1024   # per x tile; ~6x total with 2x in + 2x out + 2x PE


def _sublane_multiple(itemsize):
    if itemsize >= 4:
        return 8
    if itemsize == 2:
        return 16
    return 32


def _plan_tiles(B, rows, cols, itemsize):
    """Choose (tile_rows, tile_batch) for streaming a [B, rows, cols] view."""
    mult = _sublane_multiple(itemsize)
    row_bytes = cols * itemsize
    cap_rows = max(mult, (_TILE_BYTES_CAP // max(1, row_bytes)) // mult * mult)

    if rows <= cap_rows:
        # Whole per-batch view fits one tile.  Split into two row-tiles when
        # each half is still big (>= ~512 KiB) so v7x's two TensorCores both
        # stream along the "parallel" row axis.  Tiny views stay whole and get
        # batch-packed below instead.
        if rows * row_bytes >= 1024 * 1024 and rows >= 2 * mult:
            tl = min(rows, ((rows + 1) // 2 + mult - 1) // mult * mult)
        else:
            tl = rows
    else:
        tl = cap_rows

    num_row_tiles = pl.cdiv(rows, tl)
    tile_bytes = tl * row_bytes
    # If one step moves little data, pack several batch elements per step
    # (per-step overhead ~0.35 us; small tiles fall off the HBM roofline).
    if num_row_tiles == 1 and B > 1 and tile_bytes < _TILE_BYTES_CAP // 2:
        tb = min(B, max(1, _TILE_BYTES_CAP // max(1, tile_bytes)))
    else:
        tb = 1
    return tl, tb


# ----------------------------------------------------------------------------
# Wrapper (the module's forward pass).
# ----------------------------------------------------------------------------
def positional_encoding(x, *, tile_rows=None, tile_batch=None, in_place=True):
    """x: [B, L, D] float array.  Returns x + sinusoidal PE (same shape/dtype)."""
    B, L, D = x.shape
    itemsize = jnp.dtype(x.dtype).itemsize
    pe = _build_pe(L, D, x.dtype)                      # module buffer, x.dtype

    # Lane-dense view for small / non-128-multiple D (avoids masked vst.msk).
    if D % 128 != 0 and (L * D) % 128 == 0:
        rows, cols = (L * D) // 128, 128
        x_view = x.reshape(B, rows, cols)
        pe_view = pe.reshape(rows, cols)
    else:
        rows, cols = L, D
        x_view, pe_view = x, pe
        # TODO(synk): D not a multiple of 128 with L*D % 128 != 0 keeps the
        # natural layout; output stores are lane-masked (correct, just slower).

    tl, tb = _plan_tiles(B, rows, cols, itemsize)
    if tile_rows is not None:
        tl = tile_rows
    if tile_batch is not None:
        tb = tile_batch
    grid = (pl.cdiv(rows, tl), pl.cdiv(B, tb))

    out = pl.pallas_call(
        _add_pe_kernel,
        out_shape=jax.ShapeDtypeStruct((B, rows, cols), x.dtype),
        grid_spec=pltpu.PrefetchScalarGridSpec(
            num_scalar_prefetch=0,
            grid=grid,
            in_specs=[
                pl.BlockSpec((tb, tl, cols), lambda l, b: (b, l, 0)),
                # Batch is the innermost (sequential) grid axis, so this block
                # index is unchanged across batch steps -> the PE tile is
                # fetched once per row-tile and re-used for every batch step.
                pl.BlockSpec((tl, cols), lambda l, b: (l, 0)),
            ],
            out_specs=pl.BlockSpec((tb, tl, cols), lambda l, b: (b, l, 0)),
        ),
        compiler_params=pltpu.CompilerParams(
            # Row-tile axis shards across v7x's two TensorCores; batch stays
            # "arbitrary" (sequential) so the PE block re-use kicks in.
            dimension_semantics=("parallel", "arbitrary"),
            vmem_limit_bytes=32 * 1024 * 1024,
        ),
        # In-place add on x's HBM buffer when the surrounding program no
        # longer needs x; XLA inserts a protective copy otherwise.
        input_output_aliases=({0: 0} if in_place else {}),
    )(x_view, pe_view)
    return out.reshape(B, L, D)


# ----------------------------------------------------------------------------
# Pure-JAX reference for correctness checking.
# ----------------------------------------------------------------------------
def positional_encoding_ref(x):
    B, L, D = x.shape
    pos = jnp.arange(L, dtype=jnp.float32)[:, None]
    dim = jnp.arange(D, dtype=jnp.int32)[None, :]
    half = (dim // 2).astype(jnp.float32)
    inv_freq = jnp.exp((-2.0 * jnp.log(10000.0) / float(D)) * half)
    angle = pos * inv_freq
    pe = jnp.where((dim % 2) == 0, jnp.sin(angle), jnp.cos(angle)).astype(x.dtype)
    return x + pe[None, :, :]


if __name__ == "__main__":
    key = jax.random.PRNGKey(0)

    # Small shape consistent with the module family (batch=2, seq=8, hidden=32).
    # D=32 exercises the lane-dense flattened path + batch packing.
    B, L, D = 2, 8, 32
    x = jax.random.normal(key, (B, L, D), dtype=jnp.float32)
    ref = positional_encoding_ref(x)
    out = jax.block_until_ready(positional_encoding(x))
    assert out.shape == (B, L, D)
    assert out.dtype == x.dtype
    assert jnp.allclose(out, ref, atol=1e-5, rtol=1e-5), "mismatch vs reference"

    # Moderate shape: exercises multiple row-tiles (v7x split), sequential
    # batch steps with PE-block re-use, and the lane-dense D%128==0 path.
    B2, L2, D2 = 3, 4096, 128
    x2 = jax.random.normal(jax.random.PRNGKey(1), (B2, L2, D2), dtype=jnp.float32)
    ref2 = positional_encoding_ref(x2)
    out2 = jax.block_until_ready(positional_encoding(x2))
    assert jnp.allclose(out2, ref2, atol=1e-5, rtol=1e-5), "tiled mismatch vs reference"

    print("KERNEL_OK")
</pallas_src>

<mosaic_0001>
module attributes {stable_mosaic.version = 11 : i64} {
  func.func @_add_pe_kernel(%arg0: i32, %arg1: i32, %arg2: memref<2x2x128xf32, #tpu.memory_space<vmem>>, %arg3: memref<2x128xf32, #tpu.memory_space<vmem>>, %arg4: memref<2x2x128xf32, #tpu.memory_space<vmem>>) attributes {dimension_semantics = [#tpu.dimension_semantics<parallel>, #tpu.dimension_semantics<arbitrary>], iteration_bounds = array<i64: 1, 1>, scalar_prefetch = 0 : i64, scratch_operands = 0 : i64, tpu.core_type = #tpu.core_type<tc>, window_params = [{transform_indices = @transform_0, window_bounds = array<i64: 2, 2, 128>}, {transform_indices = @transform_1, window_bounds = array<i64: 2, 128>}, {transform_indices = @transform_2, window_bounds = array<i64: 2, 2, 128>}]} {
    %c0 = arith.constant 0 : index
    %c0_0 = arith.constant 0 : index
    %c0_1 = arith.constant 0 : index
    %0 = vector.load %arg2[%c0, %c0_0, %c0_1] : memref<2x2x128xf32, #tpu.memory_space<vmem>>, vector<2x2x128xf32>
    %c0_2 = arith.constant 0 : index
    %c0_3 = arith.constant 0 : index
    %1 = vector.load %arg3[%c0_2, %c0_3] : memref<2x128xf32, #tpu.memory_space<vmem>>, vector<2x128xf32>
    %2 = vector.shape_cast %1 : vector<2x128xf32> to vector<1x2x128xf32>
    %3 = vector.broadcast %2 : vector<1x2x128xf32> to vector<2x2x128xf32>
    %4 = arith.addf %0, %3 : vector<2x2x128xf32>
    %c0_4 = arith.constant 0 : index
    %c0_5 = arith.constant 0 : index
    %c0_6 = arith.constant 0 : index
    %5 = vector.load %arg4[%c0_4, %c0_5, %c0_6] : memref<2x2x128xf32, #tpu.memory_space<vmem>>, vector<2x2x128xf32>
    tpu.vector_store %arg4[%c0_4, %c0_5, %c0_6], %4 {strides = array<i32>} : memref<2x2x128xf32, #tpu.memory_space<vmem>>, vector<2x2x128xf32>,
    return
  }
  func.func @transform_0(%arg0: i32, %arg1: i32) -> (i32, i32, i32) {
    %c0_i32 = arith.constant 0 : i32
    %c0_i32_0 = arith.constant 0 : i32
    return %arg1, %arg0, %c0_i32 : i32, i32, i32
  }
  func.func @transform_1(%arg0: i32, %arg1: i32) -> (i32, i32) {
    %c0_i32 = arith.constant 0 : i32
    %c0_i32_0 = arith.constant 0 : i32
    return %arg0, %c0_i32 : i32, i32
  }
  func.func @transform_2(%arg0: i32, %arg1: i32) -> (i32, i32, i32) {
    %c0_i32 = arith.constant 0 : i32
    %c0_i32_0 = arith.constant 0 : i32
    return %arg1, %arg0, %c0_i32 : i32, i32, i32
  }
}

</mosaic_0001>

<llo_original>
// kernel: tpu_custom_call.1
$region0: #{tpu_custom_call.1}
  #allocation0 [shape = 'u32[]', space=smem, size = 0x4, offset = 0x4, fixed_abs, tag = 'smem constant byte address 0x4 - core index']
  #allocation1 [shape = 'u32[144,128]{1,0:T(1,128)}', space=vmem, size = 0x12000, scoped, tag = 'internal scratch']
  %s0 = inlined_call_operand.hbm [shape: f32[2,2,128], index: 0, kind: input, shape index: {}, may-alias: {0,2}]
  %s1 = inlined_call_operand.vmem [shape: f32[2,128], index: 1, kind: input, shape index: {}]
  %s2 = inlined_call_operand.hbm [shape: f32[2,2,128], index: 2, kind: output, shape index: {}, may-alias: {0,2}]
  %s3 = sld [smem:[#allocation0]]
  $region22: #{tpu_custom_call.1} parent=0
    _
  %s5 = ssub.s32 1, %s3
  %s6 = scalar_select 0, %s5, %s3
  $region1: #{tpu_custom_call.1} parent=0
    #allocation2 [shape = 'u8[2048]{0}', space=vmem, size = 0x800, scoped, tag = 'input window, operand 0, single buffered']
    #allocation3 [shape = 's32[1]{0}', space=sflag, size = 0x4, scoped, tag = 'scoped memory for tpu_custom_call.1']
    #allocation4 [shape = 's32[1]{0}', space=sflag, size = 0x4, scoped, tag = 'scoped memory for tpu_custom_call.1']
    #allocation5 [shape = 'u8[2048]{0}', space=vmem, size = 0x800, scoped, tag = 'output window, operand 0, single buffered']
    %7 = vsyncpa [#allocation3], 0
    %8 = vsyncpa [#allocation4], 0
    // Predicated region
    $region2: #{tpu_custom_call.1} parent=1 // pred_check
      _
    $region3: #{tpu_custom_call.1} parent=1 // pred_check_branch
      %10 = sbr.rel (0) target = $region5
    $region4: #{tpu_custom_call.1} parent=1 // pred_region
      %s12 = ssub.s32 64, 64
      %13 = vsyncadd [#allocation3], %s12
      %s14 = sshll.u32 [#allocation2], 4
      %s15 = int_to_ptr.vmem [resolvable:$true] %s14
      %20 = dma.hbm_to_vmem [thread:$0]  %s0, 64, %s15, [#allocation3], 32, 32, 2
    $region5: #{tpu_custom_call.1} parent=1 // pred_fallthru
      _
    // Predicated region
    $region6: #{tpu_custom_call.1} parent=1 // pred_check
      _
    $region7: #{tpu_custom_call.1} parent=1 // pred_check_branch
      %22 = sbr.rel (0) target = $region9
    $region8: #{tpu_custom_call.1} parent=1 // pred_region
      _
    $region9: #{tpu_custom_call.1} parent=1 // pred_fallthru
      _
    // Predicated region
    $region10: #{tpu_custom_call.1} parent=1 // pred_check
      _
    $region11: #{tpu_custom_call.1} parent=1 // pred_check_branch
      %24 = sbr.rel (0) target = $region13
    $region12: #{tpu_custom_call.1} parent=1 // pred_region
      %25 = dma.done [#allocation3], 64
    $region13: #{tpu_custom_call.1} parent=1 // pred_fallthru
      _
    %v26 = vld [vmem:[#allocation2] sm:$0x3]
    %v27 = vld [vmem:[#allocation2 + $0x2] sm:$0x3]
    %v28 = vld [vmem:[%s1] sm:$0x3]
    %v29 = vadd.f32 %v26, %v28
    %v30 = vadd.f32 %v27, %v28
    %31 = vst [vmem:[#allocation5] sm:$0x3] %v29
    %32 = vst [vmem:[#allocation5 + $0x2] sm:$0x3] %v30
    // Predicated region
    $region14: #{tpu_custom_call.1} parent=1 // pred_check
      _
    $region15: #{tpu_custom_call.1} parent=1 // pred_check_branch
      %34 = sbr.rel (0) target = $region17
    $region16: #{tpu_custom_call.1} parent=1 // pred_region
      %s36 = ssub.s32 64, 64
      %37 = vsyncadd [#allocation4], %s36
      %s38 = sshll.u32 [#allocation5], 4
      %s39 = int_to_ptr.vmem [resolvable:$true] %s38
      %44 = dma.vmem_to_hbm [thread:$0]  %s39, 64, %s2, [#allocation4], 32, 32, 2
    $region17: #{tpu_custom_call.1} parent=1 // pred_fallthru
      _
    // Predicated region
    $region18: #{tpu_custom_call.1} parent=1 // pred_check
      _
    $region19: #{tpu_custom_call.1} parent=1 // pred_check_branch
      %46 = sbr.rel (0) target = $region21
    $region20: #{tpu_custom_call.1} parent=1 // pred_region
      %47 = dma.done [#allocation4], 64
    $region21: #{tpu_custom_call.1} parent=1 // pred_fallthru
      _
    %48 = vsyncpa [#allocation3], 1
    %49 = vsyncpa [#allocation4], 1

</llo_original>
